<compile_context>
chip_gen: v7x
topology: tpu7x:2x2x1
jax: 0.10.0
libtpu: 0.0.40
codegen_flags: <defaults>
</compile_context>

<pallas_src>
import functools

import jax
import jax.numpy as jnp
from jax import lax
from jax.experimental import pallas as pl
from jax.experimental.pallas import tpu as pltpu

NUM_FEATURES = 16
LAYER_SIZE = 32


def _round_up(n, m):
    return ((n + m - 1) // m) * m


def _mtl_kernel(num_features,
                x_ref, s_ref,
                w1t_ref, b1_ref,
                w2t_ref, b2_ref,
                w3t_ref, b3_ref,
                wht_ref, bht_ref,
                out_ref):
    """One batch tile.  Activations are lane-dense (H, TB); output block is (8, TB)
    with rows 0..1 = head1, rows 2..3 = head2, rows 4..7 = zero padding."""
    f = num_features
    f32 = jnp.float32
    dt = w1t_ref.dtype            # operand dtype (f32 or bf16); accumulation stays f32

    x = x_ref[...]
    s = s_ref[...]
    xm = x * s                    # MaskLayer1d(value=0): zero masked-out features

    trans_b = (((1,), (1,)), ((), ()))   # contract last dims of both: A @ B.T on the MXU

    # Layer 1 with the mask-append fused in, produced directly in (H, TB) layout:
    #   cat([x*s, s], -1) @ W1  ==  (x*s) @ W1[:F] + s @ W1[F:]
    #   transposed:  h = W1[:F].T @ (x*s).T + W1[F:].T @ s.T
    h = lax.dot_general(w1t_ref[:, :f], xm, trans_b, preferred_element_type=f32)
    h = h + lax.dot_general(w1t_ref[:, f:], s, trans_b, preferred_element_type=f32)
    h = jnp.maximum(h + b1_ref[...], 0.0)            # (H, TB): lane-dense bias + ReLU

    # Layers 2 and 3, staying in (H, TB) layout:  h <- relu(W.T @ h + b)
    h = jnp.maximum(
        jnp.dot(w2t_ref[...], h.astype(dt), preferred_element_type=f32) + b2_ref[...],
        0.0)
    h = jnp.maximum(
        jnp.dot(w3t_ref[...], h.astype(dt), preferred_element_type=f32) + b3_ref[...],
        0.0)

    # Fused heads (padded to 8 sublane rows): (8, H) @ (H, TB) -> lane-dense (8, TB),
    # full-width unmasked stores.
    out_ref[...] = (jnp.dot(wht_ref[...], h.astype(dt), preferred_element_type=f32)
                    + bht_ref[...]).astype(out_ref.dtype)


def pack_params(params, *, operand_dtype=jnp.float32):
    """One-time repack of the reference params into kernel layout (hoisted out of the
    per-call path).  Weights may be bf16 operands; biases stay f32 (f32 accumulation)."""
    w1t = jnp.asarray(params["w1"]).T.astype(operand_dtype)            # (H, 2F)
    w2t = jnp.asarray(params["w2"]).T.astype(operand_dtype)            # (H, H)
    w3t = jnp.asarray(params["w3"]).T.astype(operand_dtype)            # (H, H)
    wht = jnp.concatenate([params["wh1"], params["wh2"]], axis=1).T    # (4, H)
    wht = jnp.pad(wht, ((0, 4), (0, 0))).astype(operand_dtype)         # (8, H)
    bht = jnp.concatenate([params["bh1"], params["bh2"]], axis=1).T    # (4, 1)
    bht = jnp.pad(bht, ((0, 4), (0, 0))).astype(jnp.float32)           # (8, 1)
    return {
        "w1t": w1t, "b1": jnp.asarray(params["b1"]).T.astype(jnp.float32),   # (H, 1)
        "w2t": w2t, "b2": jnp.asarray(params["b2"]).T.astype(jnp.float32),
        "w3t": w3t, "b3": jnp.asarray(params["b3"]).T.astype(jnp.float32),
        "wht": wht, "bht": bht,
    }


def multitask_forward(x, s, packed, *, max_tile=8192, split_batch_threshold=1024):
    """x, s: (B, F) float32.  Returns (v1, v2), each (B, 2) float32."""
    B, F = x.shape
    assert packed["w1t"].shape[1] == 2 * F

    op_dtype = packed["w1t"].dtype
    if x.dtype != op_dtype:
        x = x.astype(op_dtype)      # bf16 path is most valuable if inputs arrive bf16
    if s.dtype != op_dtype:
        s = s.astype(op_dtype)

    # Batch tiling: big tiles amortize the ~0.35us/step grid overhead.  Above the
    # threshold, keep >= 2 balanced tiles (lane dim a multiple of 128) so v7x's two
    # TensorCores both get work; small batches use one full-extent tile.
    if B <= split_batch_threshold:
        tb = max(_round_up(B, 8), 8)                              # single full tile
    else:
        tb = min(max_tile, _round_up((B + 1) // 2, 128))          # >= 2 balanced tiles

    padded_b = _round_up(B, tb)
    if padded_b != B:
        pad = ((0, padded_b - B), (0, 0))
        x = jnp.pad(x, pad)
        s = jnp.pad(s, pad)
    num_tiles = padded_b // tb

    row_spec = pl.BlockSpec((tb, F), lambda i: (i, 0))

    def const_spec(arr):
        return pl.BlockSpec(arr.shape, lambda i: (0, 0))   # VMEM-resident across tiles

    out_t = pl.pallas_call(
        functools.partial(_mtl_kernel, F),
        out_shape=jax.ShapeDtypeStruct((8, padded_b), jnp.float32),
        grid=(num_tiles,),
        in_specs=[
            row_spec, row_spec,
            const_spec(packed["w1t"]), const_spec(packed["b1"]),
            const_spec(packed["w2t"]), const_spec(packed["b2"]),
            const_spec(packed["w3t"]), const_spec(packed["b3"]),
            const_spec(packed["wht"]), const_spec(packed["bht"]),
        ],
        out_specs=pl.BlockSpec((8, tb), lambda i: (0, i)),
        compiler_params=pltpu.CompilerParams(
            dimension_semantics=("parallel",)),   # shard batch tiles across TCs (v7x)
    )(x, s,
      packed["w1t"], packed["b1"],
      packed["w2t"], packed["b2"],
      packed["w3t"], packed["b3"],
      packed["wht"], packed["bht"])

    out = out_t[:4, :B]       # drop head padding rows and batch padding columns
    v1 = out[:2, :].T         # (B, 2)
    v2 = out[2:, :].T         # (B, 2)
    return v1, v2


def init_params(key, num_features=NUM_FEATURES, layer_size=LAYER_SIZE):
    """Deterministic torch-Linear-like init: U(-1/sqrt(fan_in), 1/sqrt(fan_in))."""
    keys = jax.random.split(key, 10)

    def lin(kw, kb, fan_in, fan_out):
        bound = 1.0 / jnp.sqrt(jnp.float32(fan_in))
        w = jax.random.uniform(kw, (fan_in, fan_out), jnp.float32, -bound, bound)
        b = jax.random.uniform(kb, (1, fan_out), jnp.float32, -bound, bound)
        return w, b

    w1, b1 = lin(keys[0], keys[1], 2 * num_features, layer_size)
    w2, b2 = lin(keys[2], keys[3], layer_size, layer_size)
    w3, b3 = lin(keys[4], keys[5], layer_size, layer_size)
    wh1, bh1 = lin(keys[6], keys[7], layer_size, 2)
    wh2, bh2 = lin(keys[8], keys[9], layer_size, 2)

    return {"w1": w1, "b1": b1, "w2": w2, "b2": b2, "w3": w3, "b3": b3,
            "wh1": wh1, "bh1": bh1, "wh2": wh2, "bh2": bh2}


def reference_forward(x, s, p):
    h = jnp.concatenate([x * s, s], axis=1)
    h = jnp.maximum(h @ p["w1"] + p["b1"], 0.0)
    h = jnp.maximum(h @ p["w2"] + p["b2"], 0.0)
    h = jnp.maximum(h @ p["w3"] + p["b3"], 0.0)
    return h @ p["wh1"] + p["bh1"], h @ p["wh2"] + p["bh2"]


if __name__ == "__main__":
    key = jax.random.PRNGKey(0)
    k_x, k_s, k_p = jax.random.split(key, 3)
    params = init_params(k_p)

    packed_f32 = pack_params(params)                                  # exact-parity path
    packed_bf16 = pack_params(params, operand_dtype=jnp.bfloat16)     # fast path

    # (batch, split_batch_threshold, packed, atol, rtol)
    cases = [
        (8,   1024, packed_f32,  1e-4, 1e-5),   # tiny single-tile case
        (260, 1024, packed_f32,  1e-4, 1e-5),   # single padded tile, non-x128 lanes
        (300, 64,   packed_f32,  1e-4, 1e-5),   # multi-tile (2 parallel tiles) path
        (300, 64,   packed_bf16, 5e-2, 5e-2),   # bf16 operands, f32 accumulation
    ]

    for batch, thresh, packed, atol, rtol in cases:
        kx = jax.random.fold_in(k_x, batch)
        ks = jax.random.fold_in(k_s, batch)
        x = jax.random.normal(kx, (batch, NUM_FEATURES), jnp.float32)
        sm = (jax.random.uniform(ks, (batch, NUM_FEATURES)) > 0.5).astype(jnp.float32)

        fwd = jax.jit(functools.partial(multitask_forward,
                                        split_batch_threshold=thresh))
        v1, v2 = fwd(x, sm, packed)
        jax.block_until_ready((v1, v2))

        r1, r2 = reference_forward(x, sm, params)
        assert v1.shape == (batch, 2) and v2.shape == (batch, 2)
        assert jnp.allclose(v1, r1, atol=atol, rtol=rtol)
        assert jnp.allclose(v2, r2, atol=atol, rtol=rtol)

    print("KERNEL_OK")
</pallas_src>

<mosaic_0001>
module attributes {stable_mosaic.version = 11 : i64} {
  func.func @_mtl_kernel(%arg0: i32, %arg1: memref<8x16xf32, #tpu.memory_space<vmem>>, %arg2: memref<8x16xf32, #tpu.memory_space<vmem>>, %arg3: memref<32x32xf32, #tpu.memory_space<vmem>>, %arg4: memref<32x1xf32, #tpu.memory_space<vmem>>, %arg5: memref<32x32xf32, #tpu.memory_space<vmem>>, %arg6: memref<32x1xf32, #tpu.memory_space<vmem>>, %arg7: memref<32x32xf32, #tpu.memory_space<vmem>>, %arg8: memref<32x1xf32, #tpu.memory_space<vmem>>, %arg9: memref<8x32xf32, #tpu.memory_space<vmem>>, %arg10: memref<8x1xf32, #tpu.memory_space<vmem>>, %arg11: memref<8x8xf32, #tpu.memory_space<vmem>>) attributes {dimension_semantics = [#tpu.dimension_semantics<parallel>], iteration_bounds = array<i64: 1>, scalar_prefetch = 0 : i64, scratch_operands = 0 : i64, tpu.core_type = #tpu.core_type<tc>, window_params = [{transform_indices = @transform_0, window_bounds = array<i64: 8, 16>}, {transform_indices = @transform_1, window_bounds = array<i64: 8, 16>}, {pipeline_mode = #tpu.pipeline_mode<synchronous>, transform_indices = @transform_2, window_bounds = array<i64: 32, 32>}, {pipeline_mode = #tpu.pipeline_mode<synchronous>, transform_indices = @transform_3, window_bounds = array<i64: 32, 1>}, {pipeline_mode = #tpu.pipeline_mode<synchronous>, transform_indices = @transform_4, window_bounds = array<i64: 32, 32>}, {pipeline_mode = #tpu.pipeline_mode<synchronous>, transform_indices = @transform_5, window_bounds = array<i64: 32, 1>}, {pipeline_mode = #tpu.pipeline_mode<synchronous>, transform_indices = @transform_6, window_bounds = array<i64: 32, 32>}, {pipeline_mode = #tpu.pipeline_mode<synchronous>, transform_indices = @transform_7, window_bounds = array<i64: 32, 1>}, {pipeline_mode = #tpu.pipeline_mode<synchronous>, transform_indices = @transform_8, window_bounds = array<i64: 8, 32>}, {pipeline_mode = #tpu.pipeline_mode<synchronous>, transform_indices = @transform_9, window_bounds = array<i64: 8, 1>}, {transform_indices = @transform_10, window_bounds = array<i64: 8, 8>}]} {
    %c0 = arith.constant 0 : index
    %c0_0 = arith.constant 0 : index
    %0 = vector.load %arg1[%c0, %c0_0] : memref<8x16xf32, #tpu.memory_space<vmem>>, vector<8x16xf32>
    %c0_1 = arith.constant 0 : index
    %c0_2 = arith.constant 0 : index
    %1 = vector.load %arg2[%c0_1, %c0_2] : memref<8x16xf32, #tpu.memory_space<vmem>>, vector<8x16xf32>
    %2 = arith.mulf %0, %1 : vector<8x16xf32>
    %c0_3 = arith.constant 0 : index
    %c0_4 = arith.constant 0 : index
    %3 = vector.load %arg3[%c0_3, %c0_4] : memref<32x32xf32, #tpu.memory_space<vmem>>, vector<32x16xf32>
    %cst = arith.constant dense<0.000000e+00> : vector<32x8xf32>
    %4 = tpu.matmul %3, %2, %cst {dimension_numbers = #tpu.dot_dimension_numbers<[1], [1], [0], [0], [0, 0, 1, 0], [], []>} : vector<32x16xf32>, vector<8x16xf32>, vector<32x8xf32> -> vector<32x8xf32>
    %c0_5 = arith.constant 0 : index
    %c16 = arith.constant 16 : index
    %5 = vector.load %arg3[%c0_5, %c16] : memref<32x32xf32, #tpu.memory_space<vmem>>, vector<32x16xf32>
    %cst_6 = arith.constant dense<0.000000e+00> : vector<32x8xf32>
    %6 = tpu.matmul %5, %1, %cst_6 {dimension_numbers = #tpu.dot_dimension_numbers<[1], [1], [0], [0], [0, 0, 1, 0], [], []>} : vector<32x16xf32>, vector<8x16xf32>, vector<32x8xf32> -> vector<32x8xf32>
    %7 = arith.addf %4, %6 : vector<32x8xf32>
    %c0_7 = arith.constant 0 : index
    %c0_8 = arith.constant 0 : index
    %8 = vector.load %arg4[%c0_7, %c0_8] : memref<32x1xf32, #tpu.memory_space<vmem>>, vector<32x1xf32>
    %9 = vector.broadcast %8 : vector<32x1xf32> to vector<32x8xf32>
    %10 = arith.addf %7, %9 : vector<32x8xf32>
    %cst_9 = arith.constant 0.000000e+00 : f32
    %11 = vector.broadcast %cst_9 : f32 to vector<32x8xf32>
    %12 = arith.maximumf %10, %11 : vector<32x8xf32>
    %c0_10 = arith.constant 0 : index
    %c0_11 = arith.constant 0 : index
    %13 = vector.load %arg5[%c0_10, %c0_11] : memref<32x32xf32, #tpu.memory_space<vmem>>, vector<32x32xf32>
    %cst_12 = arith.constant dense<0.000000e+00> : vector<32x8xf32>
    %14 = tpu.matmul %13, %12, %cst_12 {dimension_numbers = #tpu.dot_dimension_numbers<[1], [0], [0], [1], [0, 0, 1, 1], [], []>} : vector<32x32xf32>, vector<32x8xf32>, vector<32x8xf32> -> vector<32x8xf32>
    %c0_13 = arith.constant 0 : index
    %c0_14 = arith.constant 0 : index
    %15 = vector.load %arg6[%c0_13, %c0_14] : memref<32x1xf32, #tpu.memory_space<vmem>>, vector<32x1xf32>
    %16 = vector.broadcast %15 : vector<32x1xf32> to vector<32x8xf32>
    %17 = arith.addf %14, %16 : vector<32x8xf32>
    %cst_15 = arith.constant 0.000000e+00 : f32
    %18 = vector.broadcast %cst_15 : f32 to vector<32x8xf32>
    %19 = arith.maximumf %17, %18 : vector<32x8xf32>
    %c0_16 = arith.constant 0 : index
    %c0_17 = arith.constant 0 : index
    %20 = vector.load %arg7[%c0_16, %c0_17] : memref<32x32xf32, #tpu.memory_space<vmem>>, vector<32x32xf32>
    %cst_18 = arith.constant dense<0.000000e+00> : vector<32x8xf32>
    %21 = tpu.matmul %20, %19, %cst_18 {dimension_numbers = #tpu.dot_dimension_numbers<[1], [0], [0], [1], [0, 0, 1, 1], [], []>} : vector<32x32xf32>, vector<32x8xf32>, vector<32x8xf32> -> vector<32x8xf32>
    %c0_19 = arith.constant 0 : index
    %c0_20 = arith.constant 0 : index
    %22 = vector.load %arg8[%c0_19, %c0_20] : memref<32x1xf32, #tpu.memory_space<vmem>>, vector<32x1xf32>
    %23 = vector.broadcast %22 : vector<32x1xf32> to vector<32x8xf32>
    %24 = arith.addf %21, %23 : vector<32x8xf32>
    %cst_21 = arith.constant 0.000000e+00 : f32
    %25 = vector.broadcast %cst_21 : f32 to vector<32x8xf32>
    %26 = arith.maximumf %24, %25 : vector<32x8xf32>
    %c0_22 = arith.constant 0 : index
    %c0_23 = arith.constant 0 : index
    %27 = vector.load %arg9[%c0_22, %c0_23] : memref<8x32xf32, #tpu.memory_space<vmem>>, vector<8x32xf32>
    %cst_24 = arith.constant dense<0.000000e+00> : vector<8x8xf32>
    %28 = tpu.matmul %27, %26, %cst_24 {dimension_numbers = #tpu.dot_dimension_numbers<[1], [0], [0], [1], [0, 0, 1, 1], [], []>} : vector<8x32xf32>, vector<32x8xf32>, vector<8x8xf32> -> vector<8x8xf32>
    %c0_25 = arith.constant 0 : index
    %c0_26 = arith.constant 0 : index
    %29 = vector.load %arg10[%c0_25, %c0_26] : memref<8x1xf32, #tpu.memory_space<vmem>>, vector<8x1xf32>
    %30 = vector.broadcast %29 : vector<8x1xf32> to vector<8x8xf32>
    %31 = arith.addf %28, %30 : vector<8x8xf32>
    %c0_27 = arith.constant 0 : index
    %c0_28 = arith.constant 0 : index
    %32 = vector.load %arg11[%c0_27, %c0_28] : memref<8x8xf32, #tpu.memory_space<vmem>>, vector<8x8xf32>
    tpu.vector_store %arg11[%c0_27, %c0_28], %31 {strides = array<i32>} : memref<8x8xf32, #tpu.memory_space<vmem>>, vector<8x8xf32>,
    return
  }
  func.func @transform_0(%arg0: i32) -> (i32, i32) {
    %c0_i32 = arith.constant 0 : i32
    %c0_i32_0 = arith.constant 0 : i32
    return %arg0, %c0_i32 : i32, i32
  }
  func.func @transform_1(%arg0: i32) -> (i32, i32) {
    %c0_i32 = arith.constant 0 : i32
    %c0_i32_0 = arith.constant 0 : i32
    return %arg0, %c0_i32 : i32, i32
  }
  func.func @transform_2(%arg0: i32) -> (i32, i32) {
    %c0_i32 = arith.constant 0 : i32
    %c0_i32_0 = arith.constant 0 : i32
    %c0_i32_1 = arith.constant 0 : i32
    return %c0_i32, %c0_i32_0 : i32, i32
  }
  func.func @transform_3(%arg0: i32) -> (i32, i32) {
    %c0_i32 = arith.constant 0 : i32
    %c0_i32_0 = arith.constant 0 : i32
    %c0_i32_1 = arith.constant 0 : i32
    return %c0_i32, %c0_i32_0 : i32, i32
  }
  func.func @transform_4(%arg0: i32) -> (i32, i32) {
    %c0_i32 = arith.constant 0 : i32
    %c0_i32_0 = arith.constant 0 : i32
    %c0_i32_1 = arith.constant 0 : i32
    return %c0_i32, %c0_i32_0 : i32, i32
  }
  func.func @transform_5(%arg0: i32) -> (i32, i32) {
    %c0_i32 = arith.constant 0 : i32
    %c0_i32_0 = arith.constant 0 : i32
    %c0_i32_1 = arith.constant 0 : i32
    return %c0_i32, %c0_i32_0 : i32, i32
  }
  func.func @transform_6(%arg0: i32) -> (i32, i32) {
    %c0_i32 = arith.constant 0 : i32
    %c0_i32_0 = arith.constant 0 : i32
    %c0_i32_1 = arith.constant 0 : i32
    return %c0_i32, %c0_i32_0 : i32, i32
  }
  func.func @transform_7(%arg0: i32) -> (i32, i32) {
    %c0_i32 = arith.constant 0 : i32
    %c0_i32_0 = arith.constant 0 : i32
    %c0_i32_1 = arith.constant 0 : i32
    return %c0_i32, %c0_i32_0 : i32, i32
  }
  func.func @transform_8(%arg0: i32) -> (i32, i32) {
    %c0_i32 = arith.constant 0 : i32
    %c0_i32_0 = arith.constant 0 : i32
    %c0_i32_1 = arith.constant 0 : i32
    return %c0_i32, %c0_i32_0 : i32, i32
  }
  func.func @transform_9(%arg0: i32) -> (i32, i32) {
    %c0_i32 = arith.constant 0 : i32
    %c0_i32_0 = arith.constant 0 : i32
    %c0_i32_1 = arith.constant 0 : i32
    return %c0_i32, %c0_i32_0 : i32, i32
  }
  func.func @transform_10(%arg0: i32) -> (i32, i32) {
    %c0_i32 = arith.constant 0 : i32
    %c0_i32_0 = arith.constant 0 : i32
    return %c0_i32, %arg0 : i32, i32
  }
}

</mosaic_0001>

<llo_original>
// kernel: multitask_forward.1
$region0: #{multitask_forward.1}
  #allocation0 [shape = 'u32[]', space=smem, size = 0x4, offset = 0x4, fixed_abs, tag = 'smem constant byte address 0x4 - core index']
  #allocation1 [shape = 'u32[144,128]{1,0:T(1,128)}', space=vmem, size = 0x12000, scoped, tag = 'internal scratch']
  %s0 = inlined_call_operand.vmem [shape: f32[8,16], index: 0, kind: input, shape index: {}]
  %s1 = inlined_call_operand.hbm [shape: f32[8,16], index: 1, kind: input, shape index: {}]
  %s2 = inlined_call_operand.vmem [shape: f32[32,32], index: 2, kind: input, shape index: {}]
  %s3 = inlined_call_operand.vmem [shape: f32[32,1], index: 3, kind: input, shape index: {}]
  %s4 = inlined_call_operand.vmem [shape: f32[32,32], index: 4, kind: input, shape index: {}]
  %s5 = inlined_call_operand.vmem [shape: f32[32,1], index: 5, kind: input, shape index: {}]
  %s6 = inlined_call_operand.vmem [shape: f32[32,32], index: 6, kind: input, shape index: {}]
  %s7 = inlined_call_operand.vmem [shape: f32[32,1], index: 7, kind: input, shape index: {}]
  %s8 = inlined_call_operand.vmem [shape: f32[8,32], index: 8, kind: input, shape index: {}]
  %s9 = inlined_call_operand.vmem [shape: f32[8,1], index: 9, kind: input, shape index: {}]
  %s10 = inlined_call_operand.vmem [shape: f32[8,8], index: 10, kind: output, shape index: {}]
  %s11 = sld [smem:[#allocation0]]
  $region54: #{multitask_forward.1} parent=0
    _
  %s13 = ssub.s32 1, %s11
  %s14 = scalar_select 0, %s13, %s11
  $region1: #{multitask_forward.1} parent=0
    #allocation2 [shape = 'u8[4096]{0}', space=vmem, size = 0x1000, scoped, tag = 'input window, operand 1, single buffered']
    #allocation3 [shape = 's32[1]{0}', space=sflag, size = 0x4, scoped, tag = 'scoped memory for multitask_forward.1']
    %15 = vsyncpa [#allocation3], 0
    // Predicated region
    $region2: #{multitask_forward.1} parent=1 // pred_check
      _
    $region3: #{multitask_forward.1} parent=1 // pred_check_branch
      %17 = sbr.rel (0) target = $region5
    $region4: #{multitask_forward.1} parent=1 // pred_region
      _
    $region5: #{multitask_forward.1} parent=1 // pred_fallthru
      _
    // Predicated region
    $region6: #{multitask_forward.1} parent=1 // pred_check
      _
    $region7: #{multitask_forward.1} parent=1 // pred_check_branch
      %19 = sbr.rel (0) target = $region9
    $region8: #{multitask_forward.1} parent=1 // pred_region
      %s21 = ssub.s32 128, 128
      %22 = vsyncadd [#allocation3], %s21
      %s24 = sshll.u32 [#allocation2], 4
      %s25 = int_to_ptr.vmem [resolvable:$true] %s24
      %27 = dma.hbm_to_vmem [thread:$0]  %s1, 128, %s25, [#allocation3]
    $region9: #{multitask_forward.1} parent=1 // pred_fallthru
      _
    // Predicated region
    $region10: #{multitask_forward.1} parent=1 // pred_check
      _
    $region11: #{multitask_forward.1} parent=1 // pred_check_branch
      %29 = sbr.rel (0) target = $region13
    $region12: #{multitask_forward.1} parent=1 // pred_region
      _
    $region13: #{multitask_forward.1} parent=1 // pred_fallthru
      _
    // Predicated region
    $region14: #{multitask_forward.1} parent=1 // pred_check
      _
    $region15: #{multitask_forward.1} parent=1 // pred_check_branch
      %31 = sbr.rel (0) target = $region17
    $region16: #{multitask_forward.1} parent=1 // pred_region
      _
    $region17: #{multitask_forward.1} parent=1 // pred_fallthru
      _
    // Predicated region
    $region18: #{multitask_forward.1} parent=1 // pred_check
      _
    $region19: #{multitask_forward.1} parent=1 // pred_check_branch
      %33 = sbr.rel (0) target = $region21
    $region20: #{multitask_forward.1} parent=1 // pred_region
      _
    $region21: #{multitask_forward.1} parent=1 // pred_fallthru
      _
    // Predicated region
    $region22: #{multitask_forward.1} parent=1 // pred_check
      _
    $region23: #{multitask_forward.1} parent=1 // pred_check_branch
      %35 = sbr.rel (0) target = $region25
    $region24: #{multitask_forward.1} parent=1 // pred_region
      _
    $region25: #{multitask_forward.1} parent=1 // pred_fallthru
      _
    // Predicated region
    $region26: #{multitask_forward.1} parent=1 // pred_check
      _
    $region27: #{multitask_forward.1} parent=1 // pred_check_branch
      %37 = sbr.rel (0) target = $region29
    $region28: #{multitask_forward.1} parent=1 // pred_region
      _
    $region29: #{multitask_forward.1} parent=1 // pred_fallthru
      _
    // Predicated region
    $region30: #{multitask_forward.1} parent=1 // pred_check
      _
    $region31: #{multitask_forward.1} parent=1 // pred_check_branch
      %39 = sbr.rel (0) target = $region33
    $region32: #{multitask_forward.1} parent=1 // pred_region
      _
    $region33: #{multitask_forward.1} parent=1 // pred_fallthru
      _
    // Predicated region
    $region34: #{multitask_forward.1} parent=1 // pred_check
      _
    $region35: #{multitask_forward.1} parent=1 // pred_check_branch
      %41 = sbr.rel (0) target = $region37
    $region36: #{multitask_forward.1} parent=1 // pred_region
      _
    $region37: #{multitask_forward.1} parent=1 // pred_fallthru
      _
    // Predicated region
    $region38: #{multitask_forward.1} parent=1 // pred_check
      _
    $region39: #{multitask_forward.1} parent=1 // pred_check_branch
      %43 = sbr.rel (0) target = $region41
    $region40: #{multitask_forward.1} parent=1 // pred_region
      _
    $region41: #{multitask_forward.1} parent=1 // pred_fallthru
      _
    // Predicated region
    $region42: #{multitask_forward.1} parent=1 // pred_check
      _
    $region43: #{multitask_forward.1} parent=1 // pred_check_branch
      %45 = sbr.rel (0) target = $region45
    $region44: #{multitask_forward.1} parent=1 // pred_region
      %46 = dma.done [#allocation3], 128
    $region45: #{multitask_forward.1} parent=1 // pred_fallthru
      _
    %v47 = vld [vmem:[%s0] sm:$0xff]
    %v48 = vld [vmem:[#allocation2] sm:$0xff]
    %v49 = vmul.f32 %v47, %v48
    %v50 = vld [vmem:[%s2] sm:$0xff]
    %v51 = vld [vmem:[%s2 + $0x8] sm:$0xff]
    %v52 = vld [vmem:[%s2 + $0x10] sm:$0xff]
    %v53 = vld [vmem:[%s2 + $0x18] sm:$0xff]
    %58 = vrot.lane.b32.xlu0 %v50, 112
    %v59 = vpop.permute.xlu0 %58
    %60 = vrot.lane.b32.xlu0 %v51, 112
    %v61 = vpop.permute.xlu0 %60
    %62 = vrot.lane.b32.xlu0 %v52, 112
    %v63 = vpop.permute.xlu0 %62
    %64 = vrot.lane.b32.xlu0 %v53, 112
    %v65 = vpop.permute.xlu0 %64
    %vm66 = vcmask 130048
    %v67 = vsel %vm66, %v59, 0
    %v69 = vsel %vm66, %v61, 0
    %v71 = vsel %vm66, %v63, 0
    %v73 = vsel %vm66, %v65, 0
    %v76 = vsel %vm66, %v48, 0
    %78 = vmatprep.subr.mxu0 0.0
    %79 = vmatpush1.xpose.msra.mxu0 %v76
    %80 = vmatprep.subr.mxu0 0.0
    %81 = vmatpush1.xpose.msra.mxu0 0.0
    %82 = vmatprep.subr.mxu0 0.0
    %83 = vmatpush1.xpose.msra.mxu0 0.0
    %84 = vmatprep.subr.mxu0 0.0
    %85 = vmatpush1.xpose.msra.mxu0 0.0
    %86 = vmatprep.subr.mxu0 0.0
    %87 = vmatpush1.xpose.msra.mxu0 0.0
    %88 = vmatprep.subr.mxu0 0.0
    %89 = vmatpush1.xpose.msra.mxu0 0.0
    %90 = vmatprep.subr.mxu0 0.0
    %91 = vmatpush1.xpose.msra.mxu0 0.0
    %92 = vmatprep.subr.mxu0 0.0
    %93 = vmatpush1.xpose.msra.mxu0 0.0
    %94 = vmatprep.subr.mxu0 0.0
    %95 = vmatpush1.xpose.msra.mxu0 0.0
    %96 = vmatprep.subr.mxu0 0.0
    %97 = vmatpush1.xpose.msra.mxu0 0.0
    %98 = vmatprep.subr.mxu0 0.0
    %99 = vmatpush1.xpose.msra.mxu0 0.0
    %100 = vmatprep.subr.mxu0 0.0
    %101 = vmatpush1.xpose.msra.mxu0 0.0
    %102 = vmatprep.subr.mxu0 0.0
    %103 = vmatpush1.xpose.msra.mxu0 0.0
    %104 = vmatprep.subr.mxu0 0.0
    %105 = vmatpush1.xpose.msra.mxu0 0.0
    %106 = vmatprep.subr.mxu0 0.0
    %107 = vmatpush1.xpose.msra.mxu0 0.0
    %108 = vmatprep.subr.mxu0 0.0
    %109 = vmatpush1.xpose.msra.mxu0 0.0
    %110 = vmatprep.subr.mxu0 0.0
    %111 = vmatpush1.xpose.msra.mxu0 0.0
    %112 = vmatprep.subr.mxu0 0.0
    %113 = vmatpush1.xpose.msra.mxu0 0.0
    %114 = vmatprep.subr.mxu0 0.0
    %115 = vmatpush1.xpose.msra.mxu0 0.0
    %116 = vmatprep.subr.mxu0 0.0
    %117 = vmatpush1.xpose.msra.mxu0 0.0
    %118 = vmatprep.subr.mxu0 0.0
    %119 = vmatpush1.xpose.msra.mxu0 0.0
    %120 = vmatprep.subr.mxu0 0.0
    %121 = vmatpush1.xpose.msra.mxu0 0.0
    %122 = vmatprep.subr.mxu0 0.0
    %123 = vmatpush1.xpose.msra.mxu0 0.0
    %124 = vmatprep.subr.mxu0 0.0
    %125 = vmatpush1.xpose.msra.mxu0 0.0
    %126 = vmatprep.subr.mxu0 0.0
    %127 = vmatpush1.xpose.msra.mxu0 0.0
    %128 = vmatprep.subr.mxu0 0.0
    %129 = vmatpush1.xpose.msra.mxu0 0.0
    %130 = vmatprep.subr.mxu0 0.0
    %131 = vmatpush1.xpose.msra.mxu0 0.0
    %132 = vmatprep.subr.mxu0 0.0
    %133 = vmatpush1.xpose.msra.mxu0 0.0
    %134 = vmatprep.subr.mxu0 0.0
    %135 = vmatpush1.xpose.msra.mxu0 0.0
    %136 = vmatprep.subr.mxu0 0.0
    %137 = vmatpush1.xpose.msra.mxu0 0.0
    %138 = vmatprep.subr.mxu0 0.0
    %139 = vmatpush1.xpose.msra.mxu0 0.0
    %140 = vmatprep.subr.mxu0 0.0
    %141 = vmatpush1.xpose.msra.mxu0 0.0
    %142 = vmatprep.mubr.f32.mxu0 0.0
    %143 = vmatmul.mubr.f32.gmra.mrb[0].mxu0 %v67
    %v144 = vpop.f32.mrb[0].mxu0
    %v145 = vadd.f32 0.0, %v144
    %v146 = vpop.f32.mrb[0].mxu0
    %147 = vmatprep.mubr.f32.mxu0 0.0
    %148 = vmatmul.mubr.f32.gmra.mrb[0].mxu0 %v69
    %v149 = vpop.f32.mrb[0].mxu0
    %v150 = vadd.f32 0.0, %v149
    %v151 = vpop.f32.mrb[0].mxu0
    %152 = vmatprep.mubr.f32.mxu0 0.0
    %153 = vmatmul.mubr.f32.gmra.mrb[0].mxu0 %v71
    %v154 = vpop.f32.mrb[0].mxu0
    %v155 = vadd.f32 0.0, %v154
    %v156 = vpop.f32.mrb[0].mxu0
    %157 = vmatprep.mubr.f32.mxu0 0.0
    %158 = vmatmul.mubr.f32.gmra.mrb[0].mxu0 %v73
    %v159 = vpop.f32.mrb[0].mxu0
    %v160 = vadd.f32 0.0, %v159
    %v161 = vpop.f32.mrb[0].mxu0
    %162 = vdwg.mxu0
    %v163 = vsel %vm66, %v50, 0
    %v165 = vsel %vm66, %v51, 0
    %v167 = vsel %vm66, %v52, 0
    %v169 = vsel %vm66, %v53, 0
    %v172 = vsel %vm66, %v49, 0
    %174 = vmatprep.subr.mxu0 0.0
    %175 = vmatpush1.xpose.msra.mxu0 %v172
    %176 = vmatprep.subr.mxu0 0.0
    %177 = vmatpush1.xpose.msra.mxu0 0.0
    %178 = vmatprep.subr.mxu0 0.0
    %179 = vmatpush1.xpose.msra.mxu0 0.0
    %180 = vmatprep.subr.mxu0 0.0
    %181 = vmatpush1.xpose.msra.mxu0 0.0
    %182 = vmatprep.subr.mxu0 0.0
    %183 = vmatpush1.xpose.msra.mxu0 0.0
    %184 = vmatprep.subr.mxu0 0.0
    %185 = vmatpush1.xpose.msra.mxu0 0.0
    %186 = vmatprep.subr.mxu0 0.0
    %187 = vmatpush1.xpose.msra.mxu0 0.0
    %188 = vmatprep.subr.mxu0 0.0
    %189 = vmatpush1.xpose.msra.mxu0 0.0
    %190 = vmatprep.subr.mxu0 0.0
    %191 = vmatpush1.xpose.msra.mxu0 0.0
    %192 = vmatprep.subr.mxu0 0.0
    %193 = vmatpush1.xpose.msra.mxu0 0.0
    %194 = vmatprep.subr.mxu0 0.0
    %195 = vmatpush1.xpose.msra.mxu0 0.0
    %196 = vmatprep.subr.mxu0 0.0
    %197 = vmatpush1.xpose.msra.mxu0 0.0
    %198 = vmatprep.subr.mxu0 0.0
    %199 = vmatpush1.xpose.msra.mxu0 0.0
    %200 = vmatprep.subr.mxu0 0.0
    %201 = vmatpush1.xpose.msra.mxu0 0.0
    %202 = vmatprep.subr.mxu0 0.0
    %203 = vmatpush1.xpose.msra.mxu0 0.0
    %204 = vmatprep.subr.mxu0 0.0
    %205 = vmatpush1.xpose.msra.mxu0 0.0
    %206 = vmatprep.subr.mxu0 0.0
    %207 = vmatpush1.xpose.msra.mxu0 0.0
    %208 = vmatprep.subr.mxu0 0.0
    %209 = vmatpush1.xpose.msra.mxu0 0.0
    %210 = vmatprep.subr.mxu0 0.0
    %211 = vmatpush1.xpose.msra.mxu0 0.0
    %212 = vmatprep.subr.mxu0 0.0
    %213 = vmatpush1.xpose.msra.mxu0 0.0
    %214 = vmatprep.subr.mxu0 0.0
    %215 = vmatpush1.xpose.msra.mxu0 0.0
    %216 = vmatprep.subr.mxu0 0.0
    %217 = vmatpush1.xpose.msra.mxu0 0.0
    %218 = vmatprep.subr.mxu0 0.0
    %219 = vmatpush1.xpose.msra.mxu0 0.0
    %220 = vmatprep.subr.mxu0 0.0
    %221 = vmatpush1.xpose.msra.mxu0 0.0
    %222 = vmatprep.subr.mxu0 0.0
    %223 = vmatpush1.xpose.msra.mxu0 0.0
    %224 = vmatprep.subr.mxu0 0.0
    %225 = vmatpush1.xpose.msra.mxu0 0.0
    %226 = vmatprep.subr.mxu0 0.0
    %227 = vmatpush1.xpose.msra.mxu0 0.0
    %228 = vmatprep.subr.mxu0 0.0
    %229 = vmatpush1.xpose.msra.mxu0 0.0
    %230 = vmatprep.subr.mxu0 0.0
    %231 = vmatpush1.xpose.msra.mxu0 0.0
    %232 = vmatprep.subr.mxu0 0.0
    %233 = vmatpush1.xpose.msra.mxu0 0.0
    %234 = vmatprep.subr.mxu0 0.0
    %235 = vmatpush1.xpose.msra.mxu0 0.0
    %236 = vmatprep.subr.mxu0 0.0
    %237 = vmatpush1.xpose.msra.mxu0 0.0
    %238 = vmatprep.mubr.f32.mxu0 0.0
    %239 = vmatmul.mubr.f32.gmra.mrb[0].mxu0 %v163
    %v240 = vpop.f32.mrb[0].mxu0
    %v241 = vadd.f32 %v145, %v240
    %v242 = vpop.f32.mrb[0].mxu0
    %243 = vmatprep.mubr.f32.mxu0 0.0
    %244 = vmatmul.mubr.f32.gmra.mrb[0].mxu0 %v165
    %v245 = vpop.f32.mrb[0].mxu0
    %v246 = vadd.f32 %v150, %v245
    %v247 = vpop.f32.mrb[0].mxu0
    %248 = vmatprep.mubr.f32.mxu0 0.0
    %249 = vmatmul.mubr.f32.gmra.mrb[0].mxu0 %v167
    %v250 = vpop.f32.mrb[0].mxu0
    %v251 = vadd.f32 %v155, %v250
    %v252 = vpop.f32.mrb[0].mxu0
    %253 = vmatprep.mubr.f32.mxu0 0.0
    %254 = vmatmul.mubr.f32.gmra.mrb[0].mxu0 %v169
    %v255 = vpop.f32.mrb[0].mxu0
    %v256 = vadd.f32 %v160, %v255
    %v257 = vpop.f32.mrb[0].mxu0
    %258 = vdwg.mxu0
    %v259 = vld [vmem:[%s3] sm:$0xff]
    %v260 = vld [vmem:[%s3 + $0x8] sm:$0xff]
    %v261 = vld [vmem:[%s3 + $0x10] sm:$0xff]
    %v262 = vld [vmem:[%s3 + $0x18] sm:$0xff]
    %264 = vset.pattern.permute.xlu0 0
    %265 = vperm.xlu0 %264, %v259
    %v266 = vpop.permute.xlu0 %265
    %269 = vset.pattern.permute.xlu0 0
    %270 = vperm.xlu0 %269, %v260
    %v271 = vpop.permute.xlu0 %270
    %274 = vset.pattern.permute.xlu0 0
    %275 = vperm.xlu0 %274, %v261
    %v276 = vpop.permute.xlu0 %275
    %279 = vset.pattern.permute.xlu0 0
    %280 = vperm.xlu0 %279, %v262
    %v281 = vpop.permute.xlu0 %280
    %v283 = vadd.f32 %v241, %v266
    %v284 = vadd.f32 %v246, %v271
    %v285 = vadd.f32 %v251, %v276
    %v286 = vadd.f32 %v256, %v281
    %v287 = vmax.f32 %v283, 0.0
    %v288 = vmax.f32 %v284, 0.0
    %v289 = vmax.f32 %v285, 0.0
    %v290 = vmax.f32 %v286, 0.0
    %v291 = vld [vmem:[%s4] sm:$0xff]
    %v292 = vld [vmem:[%s4 + $0x8] sm:$0xff]
    %v293 = vld [vmem:[%s4 + $0x10] sm:$0xff]
    %v294 = vld [vmem:[%s4 + $0x18] sm:$0xff]
    %v295 = vld [vmem:[%s5] sm:$0xff]
    %v296 = vld [vmem:[%s5 + $0x8] sm:$0xff]
    %v297 = vld [vmem:[%s5 + $0x10] sm:$0xff]
    %v298 = vld [vmem:[%s5 + $0x18] sm:$0xff]
    %300 = vset.pattern.permute.xlu0 0
    %301 = vperm.xlu0 %300, %v295
    %v302 = vpop.permute.xlu0 %301
    %305 = vset.pattern.permute.xlu0 0
    %306 = vperm.xlu0 %305, %v296
    %v307 = vpop.permute.xlu0 %306
    %310 = vset.pattern.permute.xlu0 0
    %311 = vperm.xlu0 %310, %v297
    %v312 = vpop.permute.xlu0 %311
    %315 = vset.pattern.permute.xlu0 0
    %316 = vperm.xlu0 %315, %v298
    %v317 = vpop.permute.xlu0 %316
    %vm319 = vcmask 261120
    %v321 = vsel %vm319, %v291, 0
    %v324 = vsel %vm319, %v292, 0
    %v327 = vsel %vm319, %v293, 0
    %v330 = vsel %vm319, %v294, 0
    %332 = vmatprep.subr.mxu0 0.0
    %333 = vmatpush1.msra.mxu0 %v287
    %334 = vmatprep.subr.mxu0 0.0
    %335 = vmatpush1.msra.mxu0 %v288
    %336 = vmatprep.subr.mxu0 0.0
    %337 = vmatpush1.msra.mxu0 %v289
    %338 = vmatprep.subr.mxu0 0.0
    %339 = vmatpush1.msra.mxu0 %v290
    %340 = vmatprep.subr.mxu0 0.0
    %341 = vmatpush1.msra.mxu0 0.0
    %342 = vmatprep.subr.mxu0 0.0
    %343 = vmatpush1.msra.mxu0 0.0
    %344 = vmatprep.subr.mxu0 0.0
    %345 = vmatpush1.msra.mxu0 0.0
    %346 = vmatprep.subr.mxu0 0.0
    %347 = vmatpush1.msra.mxu0 0.0
    %348 = vmatprep.subr.mxu0 0.0
    %349 = vmatpush1.msra.mxu0 0.0
    %350 = vmatprep.subr.mxu0 0.0
    %351 = vmatpush1.msra.mxu0 0.0
    %352 = vmatprep.subr.mxu0 0.0
    %353 = vmatpush1.msra.mxu0 0.0
    %354 = vmatprep.subr.mxu0 0.0
    %355 = vmatpush1.msra.mxu0 0.0
    %356 = vmatprep.subr.mxu0 0.0
    %357 = vmatpush1.msra.mxu0 0.0
    %358 = vmatprep.subr.mxu0 0.0
    %359 = vmatpush1.msra.mxu0 0.0
    %360 = vmatprep.subr.mxu0 0.0
    %361 = vmatpush1.msra.mxu0 0.0
    %362 = vmatprep.subr.mxu0 0.0
    %363 = vmatpush1.msra.mxu0 0.0
    %364 = vmatprep.subr.mxu0 0.0
    %365 = vmatpush1.msra.mxu0 0.0
    %366 = vmatprep.subr.mxu0 0.0
    %367 = vmatpush1.msra.mxu0 0.0
    %368 = vmatprep.subr.mxu0 0.0
    %369 = vmatpush1.msra.mxu0 0.0
    %370 = vmatprep.subr.mxu0 0.0
    %371 = vmatpush1.msra.mxu0 0.0
    %372 = vmatprep.subr.mxu0 0.0
    %373 = vmatpush1.msra.mxu0 0.0
    %374 = vmatprep.subr.mxu0 0.0
    %375 = vmatpush1.msra.mxu0 0.0
    %376 = vmatprep.subr.mxu0 0.0
    %377 = vmatpush1.msra.mxu0 0.0
    %378 = vmatprep.subr.mxu0 0.0
    %379 = vmatpush1.msra.mxu0 0.0
    %380 = vmatprep.subr.mxu0 0.0
    %381 = vmatpush1.msra.mxu0 0.0
    %382 = vmatprep.subr.mxu0 0.0
    %383 = vmatpush1.msra.mxu0 0.0
    %384 = vmatprep.subr.mxu0 0.0
    %385 = vmatpush1.msra.mxu0 0.0
    %386 = vmatprep.subr.mxu0 0.0
    %387 = vmatpush1.msra.mxu0 0.0
    %388 = vmatprep.subr.mxu0 0.0
    %389 = vmatpush1.msra.mxu0 0.0
    %390 = vmatprep.subr.mxu0 0.0
    %391 = vmatpush1.msra.mxu0 0.0
    %392 = vmatprep.subr.mxu0 0.0
    %393 = vmatpush1.msra.mxu0 0.0
    %394 = vmatprep.subr.mxu0 0.0
    %395 = vmatpush1.msra.mxu0 0.0
    %396 = vmatprep.mubr.f32.mxu0 0.0
    %397 = vmatmul.mubr.f32.gmra.mrb[0].mxu0 %v321
    %v398 = vpop.f32.mrb[0].mxu0
    %v399 = vadd.f32 %v302, %v398
    %v400 = vpop.f32.mrb[0].mxu0
    %401 = vmatprep.mubr.f32.mxu0 0.0
    %402 = vmatmul.mubr.f32.gmra.mrb[0].mxu0 %v324
    %v403 = vpop.f32.mrb[0].mxu0
    %v404 = vadd.f32 %v307, %v403
    %v405 = vpop.f32.mrb[0].mxu0
    %406 = vmatprep.mubr.f32.mxu0 0.0
    %407 = vmatmul.mubr.f32.gmra.mrb[0].mxu0 %v327
    %v408 = vpop.f32.mrb[0].mxu0
    %v409 = vadd.f32 %v312, %v408
    %v410 = vpop.f32.mrb[0].mxu0
    %411 = vmatprep.mubr.f32.mxu0 0.0
    %412 = vmatmul.mubr.f32.gmra.mrb[0].mxu0 %v330
    %v413 = vpop.f32.mrb[0].mxu0
    %v414 = vadd.f32 %v317, %v413
    %v415 = vpop.f32.mrb[0].mxu0
    %416 = vdwg.mxu0
    %v417 = vmax.f32 %v399, 0.0
    %v418 = vmax.f32 %v404, 0.0
    %v419 = vmax.f32 %v409, 0.0
    %v420 = vmax.f32 %v414, 0.0
    %v421 = vld [vmem:[%s6] sm:$0xff]
    %v422 = vld [vmem:[%s6 + $0x8] sm:$0xff]
    %v423 = vld [vmem:[%s6 + $0x10] sm:$0xff]
    %v424 = vld [vmem:[%s6 + $0x18] sm:$0xff]
    %v425 = vld [vmem:[%s7] sm:$0xff]
    %v426 = vld [vmem:[%s7 + $0x8] sm:$0xff]
    %v427 = vld [vmem:[%s7 + $0x10] sm:$0xff]
    %v428 = vld [vmem:[%s7 + $0x18] sm:$0xff]
    %430 = vset.pattern.permute.xlu0 0
    %431 = vperm.xlu0 %430, %v425
    %v432 = vpop.permute.xlu0 %431
    %435 = vset.pattern.permute.xlu0 0
    %436 = vperm.xlu0 %435, %v426
    %v437 = vpop.permute.xlu0 %436
    %440 = vset.pattern.permute.xlu0 0
    %441 = vperm.xlu0 %440, %v427
    %v442 = vpop.permute.xlu0 %441
    %445 = vset.pattern.permute.xlu0 0
    %446 = vperm.xlu0 %445, %v428
    %v447 = vpop.permute.xlu0 %446
    %v450 = vsel %vm319, %v421, 0
    %v453 = vsel %vm319, %v422, 0
    %v456 = vsel %vm319, %v423, 0
    %v459 = vsel %vm319, %v424, 0
    %461 = vmatprep.subr.mxu0 0.0
    %462 = vmatpush1.msra.mxu0 %v417
    %463 = vmatprep.subr.mxu0 0.0
    %464 = vmatpush1.msra.mxu0 %v418
    %465 = vmatprep.subr.mxu0 0.0
    %466 = vmatpush1.msra.mxu0 %v419
    %467 = vmatprep.subr.mxu0 0.0
    %468 = vmatpush1.msra.mxu0 %v420
    %469 = vmatprep.subr.mxu0 0.0
    %470 = vmatpush1.msra.mxu0 0.0
    %471 = vmatprep.subr.mxu0 0.0
    %472 = vmatpush1.msra.mxu0 0.0
    %473 = vmatprep.subr.mxu0 0.0
    %474 = vmatpush1.msra.mxu0 0.0
    %475 = vmatprep.subr.mxu0 0.0
    %476 = vmatpush1.msra.mxu0 0.0
    %477 = vmatprep.subr.mxu0 0.0
    %478 = vmatpush1.msra.mxu0 0.0
    %479 = vmatprep.subr.mxu0 0.0
    %480 = vmatpush1.msra.mxu0 0.0
    %481 = vmatprep.subr.mxu0 0.0
    %482 = vmatpush1.msra.mxu0 0.0
    %483 = vmatprep.subr.mxu0 0.0
    %484 = vmatpush1.msra.mxu0 0.0
    %485 = vmatprep.subr.mxu0 0.0
    %486 = vmatpush1.msra.mxu0 0.0
    %487 = vmatprep.subr.mxu0 0.0
    %488 = vmatpush1.msra.mxu0 0.0
    %489 = vmatprep.subr.mxu0 0.0
    %490 = vmatpush1.msra.mxu0 0.0
    %491 = vmatprep.subr.mxu0 0.0
    %492 = vmatpush1.msra.mxu0 0.0
    %493 = vmatprep.subr.mxu0 0.0
    %494 = vmatpush1.msra.mxu0 0.0
    %495 = vmatprep.subr.mxu0 0.0
    %496 = vmatpush1.msra.mxu0 0.0
    %497 = vmatprep.subr.mxu0 0.0
    %498 = vmatpush1.msra.mxu0 0.0
    %499 = vmatprep.subr.mxu0 0.0
    %500 = vmatpush1.msra.mxu0 0.0
    %501 = vmatprep.subr.mxu0 0.0
    %502 = vmatpush1.msra.mxu0 0.0
    %503 = vmatprep.subr.mxu0 0.0
    %504 = vmatpush1.msra.mxu0 0.0
    %505 = vmatprep.subr.mxu0 0.0
    %506 = vmatpush1.msra.mxu0 0.0
    %507 = vmatprep.subr.mxu0 0.0
    %508 = vmatpush1.msra.mxu0 0.0
    %509 = vmatprep.subr.mxu0 0.0
    %510 = vmatpush1.msra.mxu0 0.0
    %511 = vmatprep.subr.mxu0 0.0
    %512 = vmatpush1.msra.mxu0 0.0
    %513 = vmatprep.subr.mxu0 0.0
    %514 = vmatpush1.msra.mxu0 0.0
    %515 = vmatprep.subr.mxu0 0.0
    %516 = vmatpush1.msra.mxu0 0.0
    %517 = vmatprep.subr.mxu0 0.0
    %518 = vmatpush1.msra.mxu0 0.0
    %519 = vmatprep.subr.mxu0 0.0
    %520 = vmatpush1.msra.mxu0 0.0
    %521 = vmatprep.subr.mxu0 0.0
    %522 = vmatpush1.msra.mxu0 0.0
    %523 = vmatprep.subr.mxu0 0.0
    %524 = vmatpush1.msra.mxu0 0.0
    %525 = vmatprep.mubr.f32.mxu0 0.0
    %526 = vmatmul.mubr.f32.gmra.mrb[0].mxu0 %v450
    %v527 = vpop.f32.mrb[0].mxu0
    %v528 = vadd.f32 %v432, %v527
    %v529 = vpop.f32.mrb[0].mxu0
    %530 = vmatprep.mubr.f32.mxu0 0.0
    %531 = vmatmul.mubr.f32.gmra.mrb[0].mxu0 %v453
    %v532 = vpop.f32.mrb[0].mxu0
    %v533 = vadd.f32 %v437, %v532
    %v534 = vpop.f32.mrb[0].mxu0
    %535 = vmatprep.mubr.f32.mxu0 0.0
    %536 = vmatmul.mubr.f32.gmra.mrb[0].mxu0 %v456
    %v537 = vpop.f32.mrb[0].mxu0
    %v538 = vadd.f32 %v442, %v537
    %v539 = vpop.f32.mrb[0].mxu0
    %540 = vmatprep.mubr.f32.mxu0 0.0
    %541 = vmatmul.mubr.f32.gmra.mrb[0].mxu0 %v459
    %v542 = vpop.f32.mrb[0].mxu0
    %v543 = vadd.f32 %v447, %v542
    %v544 = vpop.f32.mrb[0].mxu0
    %545 = vdwg.mxu0
    %v546 = vmax.f32 %v528, 0.0
    %v547 = vmax.f32 %v533, 0.0
    %v548 = vmax.f32 %v538, 0.0
    %v549 = vmax.f32 %v543, 0.0
    %v550 = vld [vmem:[%s8] sm:$0xff]
    %v551 = vld [vmem:[%s9] sm:$0xff]
    %553 = vset.pattern.permute.xlu0 0
    %554 = vperm.xlu0 %553, %v551
    %v555 = vpop.permute.xlu0 %554
    %v558 = vsel %vm319, %v550, 0
    %560 = vmatprep.subr.mxu0 0.0
    %561 = vmatpush1.msra.mxu0 %v546
    %562 = vmatprep.subr.mxu0 0.0
    %563 = vmatpush1.msra.mxu0 %v547
    %564 = vmatprep.subr.mxu0 0.0
    %565 = vmatpush1.msra.mxu0 %v548
    %566 = vmatprep.subr.mxu0 0.0
    %567 = vmatpush1.msra.mxu0 %v549
    %568 = vmatprep.subr.mxu0 0.0
    %569 = vmatpush1.msra.mxu0 0.0
    %570 = vmatprep.subr.mxu0 0.0
    %571 = vmatpush1.msra.mxu0 0.0
    %572 = vmatprep.subr.mxu0 0.0
    %573 = vmatpush1.msra.mxu0 0.0
    %574 = vmatprep.subr.mxu0 0.0
    %575 = vmatpush1.msra.mxu0 0.0
    %576 = vmatprep.subr.mxu0 0.0
    %577 = vmatpush1.msra.mxu0 0.0
    %578 = vmatprep.subr.mxu0 0.0
    %579 = vmatpush1.msra.mxu0 0.0
    %580 = vmatprep.subr.mxu0 0.0
    %581 = vmatpush1.msra.mxu0 0.0
    %582 = vmatprep.subr.mxu0 0.0
    %583 = vmatpush1.msra.mxu0 0.0
    %584 = vmatprep.subr.mxu0 0.0
    %585 = vmatpush1.msra.mxu0 0.0
    %586 = vmatprep.subr.mxu0 0.0
    %587 = vmatpush1.msra.mxu0 0.0
    %588 = vmatprep.subr.mxu0 0.0
    %589 = vmatpush1.msra.mxu0 0.0
    %590 = vmatprep.subr.mxu0 0.0
    %591 = vmatpush1.msra.mxu0 0.0
    %592 = vmatprep.subr.mxu0 0.0
    %593 = vmatpush1.msra.mxu0 0.0
    %594 = vmatprep.subr.mxu0 0.0
    %595 = vmatpush1.msra.mxu0 0.0
    %596 = vmatprep.subr.mxu0 0.0
    %597 = vmatpush1.msra.mxu0 0.0
    %598 = vmatprep.subr.mxu0 0.0
    %599 = vmatpush1.msra.mxu0 0.0
    %600 = vmatprep.subr.mxu0 0.0
    %601 = vmatpush1.msra.mxu0 0.0
    %602 = vmatprep.subr.mxu0 0.0
    %603 = vmatpush1.msra.mxu0 0.0
    %604 = vmatprep.subr.mxu0 0.0
    %605 = vmatpush1.msra.mxu0 0.0
    %606 = vmatprep.subr.mxu0 0.0
    %607 = vmatpush1.msra.mxu0 0.0
    %608 = vmatprep.subr.mxu0 0.0
    %609 = vmatpush1.msra.mxu0 0.0
    %610 = vmatprep.subr.mxu0 0.0
    %611 = vmatpush1.msra.mxu0 0.0
    %612 = vmatprep.subr.mxu0 0.0
    %613 = vmatpush1.msra.mxu0 0.0
    %614 = vmatprep.subr.mxu0 0.0
    %615 = vmatpush1.msra.mxu0 0.0
    %616 = vmatprep.subr.mxu0 0.0
    %617 = vmatpush1.msra.mxu0 0.0
    %618 = vmatprep.subr.mxu0 0.0
    %619 = vmatpush1.msra.mxu0 0.0
    %620 = vmatprep.subr.mxu0 0.0
    %621 = vmatpush1.msra.mxu0 0.0
    %622 = vmatprep.subr.mxu0 0.0
    %623 = vmatpush1.msra.mxu0 0.0
    %624 = vmatprep.mubr.f32.mxu0 0.0
    %625 = vmatmul.mubr.f32.gmra.mrb[0].mxu0 %v558
    %v626 = vpop.f32.mrb[0].mxu0
    %v627 = vadd.f32 %v555, %v626
    %v628 = vpop.f32.mrb[0].mxu0
    %629 = vdwg.mxu0
    %vm630 = vcmask 64512
    %631 = vst.msk [vmem:[%s10] sm:$0xff] %vm630, %v627
    // Predicated region
    $region46: #{multitask_forward.1} parent=1 // pred_check
      _
    $region47: #{multitask_forward.1} parent=1 // pred_check_branch
      %633 = sbr.rel (0) target = $region49
    $region48: #{multitask_forward.1} parent=1 // pred_region
      _
    $region49: #{multitask_forward.1} parent=1 // pred_fallthru
      _
    // Predicated region
    $region50: #{multitask_forward.1} parent=1 // pred_check
      _
    $region51: #{multitask_forward.1} parent=1 // pred_check_branch
      %635 = sbr.rel (0) target = $region53
    $region52: #{multitask_forward.1} parent=1 // pred_region
      _
    $region53: #{multitask_forward.1} parent=1 // pred_fallthru
      _
    %636 = vsyncpa [#allocation3], 1

</llo_original>
